<compile_context>
chip_gen: v7x
topology: tpu7x:2x2x1
jax: 0.10.0
libtpu: 0.0.40
codegen_flags: <defaults>
</compile_context>

<pallas_src>
import functools

import jax
import jax.numpy as jnp
import numpy as np
from jax import lax
from jax.experimental import pallas as pl
from jax.experimental.pallas import tpu as pltpu

TOP_K = 5
BN_EPS = 1e-5


def sortnet_kernel(sv_ref, inp_ref, w0_ref, b0_ref, w1_ref, b1_ref,
                   w2_ref, b2_ref, feat_ref, idx_ref,
                   *, b_blk, n_pad, n_valid, top_k, kb_pad):
    """One grid step = B_blk batch elements, (batch, point) flattened on lanes."""
    x = sv_ref[0]          # [F,  B_blk*N_pad]   (possibly bf16)
    a_in = inp_ref[0]      # [C,  B_blk*N_pad]   (possibly bf16)
    c_in = a_in.shape[0]

    # --- rFF: three lane-dense matmuls (BN folded into W/b in the wrapper) ---
    h = jnp.maximum(jnp.dot(w0_ref[...], x, preferred_element_type=jnp.float32)
                    + b0_ref[...], 0.0)                       # [64, B_blk*N_pad]
    h = jnp.maximum(jnp.dot(w1_ref[...], h, preferred_element_type=jnp.float32)
                    + b1_ref[...], 0.0)                       # [16, B_blk*N_pad]
    s = jnp.maximum(jnp.dot(w2_ref[...], h, preferred_element_type=jnp.float32)
                    + b2_ref[...], 0.0)                       # [1,  B_blk*N_pad]
    s = s.astype(jnp.float32)

    # [input ; score] and its per-(batch, point) 3-D view.  n_pad is a multiple
    # of 128, so this is a single lane-aligned relayout (replaces the old
    # per-segment slicing + concatenate).  Keep all VPU work in f32 (v5e).
    a3 = jnp.concatenate([a_in.astype(jnp.float32), s], axis=0)
    a3 = a3.reshape(c_in + 1, b_blk, n_pad)                   # [C+1, B_blk, N_pad]
    s_rows = a3[c_in]                                         # [B_blk, N_pad]

    col_ids = lax.broadcasted_iota(jnp.int32, (b_blk, n_pad), 1)
    rank_ids = lax.broadcasted_iota(jnp.int32, (b_blk, 128), 1)

    # Mask the padded point columns out of the top-k.
    work = jnp.where(col_ids < n_valid, s_rows, -jnp.inf)

    # --- iterative top-k (k small & static): argmax, record index, mask ------
    # TODO(synk): no guard for top_k > n_valid (duplicate selections).
    idx_mat = jnp.zeros((b_blk, 128), jnp.int32)              # lane-dense idx slab
    feat_cols = []
    for j in range(top_k):
        m = jnp.max(work, axis=-1, keepdims=True)                     # [B_blk, 1]
        idx_j = jnp.min(jnp.where(work == m, col_ids, n_pad),
                        axis=-1, keepdims=True)                       # first max
        sel = col_ids == idx_j                                        # [B_blk, N_pad]
        work = jnp.where(sel, -jnp.inf, work)
        idx_mat = jnp.where(rank_ids == j, idx_j, idx_mat)
        # Gather rank j for all C+1 channels: masked reduce over the point axis.
        # Cost is linear in B_blk (no flat one-hot, no transpose into the MXU).
        g_j = jnp.sum(a3 * sel.astype(jnp.float32)[None], axis=-1)    # [C+1, B_blk]
        feat_cols.append(g_j)

    kb = top_k * b_blk
    if kb_pad > kb:  # pad the feat slab to a 128-lane multiple (unmasked store)
        feat_cols.append(jnp.zeros((c_in + 1, kb_pad - kb), jnp.float32))

    # Column order of the feat slab: j * B_blk + b_local (un-permuted in wrapper).
    feat_ref[0] = jnp.concatenate(feat_cols, axis=1).astype(feat_ref.dtype)
    idx_ref[0] = idx_mat


def _pick_b_blk(batch, n_pad, f, c):
    """Batch elements per grid step.

    Target a large lane width (~8192) so each rFF matmul streams many full MXU
    passes and the ~0.35us/step grid overhead is amortized, while keeping the
    per-step VMEM footprint (double-buffered inputs + activations, all f32)
    inside every generation's scoped-VMEM default (v7x: 64 MiB physical,
    ~32 MiB scoped).  If batch is large enough, nb >= 2 so megacore sharding
    (v7x) has something to split.
    """
    lane_target = 8192
    b_blk = max(1, lane_target // n_pad)

    # Rough per-lane VMEM bytes: 2x double-buffered inputs (F+C), h1/h2 (64+16),
    # a3 + one gather temp (2*(C+1)); budget ~16 MiB of tiles.
    bytes_per_lane = 4 * (2 * 2 * (f + c) + 64 + 16 + 2 * (c + 1))
    vmem_budget = 16 * 1024 * 1024
    b_blk = min(b_blk, max(1, vmem_budget // (bytes_per_lane * n_pad)))

    b_blk = max(1, min(b_blk, batch, 1024))
    if b_blk >= 8:
        b_blk = (b_blk // 8) * 8          # keep the [B_blk, N] view sublane-aligned
    return b_blk


def _fold_bn(w, p):
    """Fold conv bias + inference BatchNorm into (W', b')."""
    scale = p[:, 1] * lax.rsqrt(p[:, 4] + BN_EPS)          # gamma / sqrt(var+eps)
    wf = (w * scale[:, None]).astype(jnp.float32)
    bf = ((p[:, 0] - p[:, 3]) * scale + p[:, 2])[:, None].astype(jnp.float32)
    return wf, bf


@functools.partial(jax.jit, static_argnames=("input_dtype",))
def sortnet_forward(sortvec, inp, w0, p0, w1, p1, w2, p2,
                    input_dtype=jnp.float32):
    """sortvec: [B,1,F,N] (NCHW), inp: [B,C,N] -> (feat [B,C+1,K], idx [B,K]).

    input_dtype=jnp.bfloat16 ships the big lane-dense tiles (and W0) as bf16
    with f32 accumulation (recommended on v6e/v7x); scores/top-k stay f32.
    """
    b, _, f, n = sortvec.shape
    c = inp.shape[1]
    k = TOP_K

    n_pad = -(-n // 128) * 128                  # lane-align point segments
    b_blk = _pick_b_blk(b, n_pad, f, c)
    nb = -(-b // b_blk)                         # cdiv
    b_pad = nb * b_blk
    bn = b_blk * n_pad
    kb = k * b_blk
    kb_pad = -(-kb // 128) * 128                # lane-dense feat slab width

    w0f, b0f = _fold_bn(w0, p0)
    w1f, b1f = _fold_bn(w1, p1)
    w2f, b2f = _fold_bn(w2, p2)

    sv = sortvec.reshape(b, f, n)
    sv = jnp.pad(sv, ((0, b_pad - b), (0, 0), (0, n_pad - n)))
    inp_p = jnp.pad(inp, ((0, b_pad - b), (0, 0), (0, n_pad - n)))

    # Flatten (batch_local, point) onto lanes: [nb, F, B_blk*N_pad] etc.
    # TODO(synk): this wrapper transpose is one extra HBM pass over sv/inp;
    # doing the (b,n)->lane flatten in VMEM (blocking the original [B,F,N]
    # layout) would save it, but the in-kernel relayout is not guaranteed to
    # lower cleanly for arbitrary F/N, so it stays in XLA for now.
    sv_f = sv.reshape(nb, b_blk, f, n_pad).transpose(0, 2, 1, 3).reshape(nb, f, bn)
    in_f = inp_p.reshape(nb, b_blk, c, n_pad).transpose(0, 2, 1, 3).reshape(nb, c, bn)

    if input_dtype != jnp.float32:
        sv_f = sv_f.astype(input_dtype)
        in_f = in_f.astype(input_dtype)
        w0f = w0f.astype(input_dtype)           # only layer 0 contracts bf16 data

    kernel = functools.partial(sortnet_kernel, b_blk=b_blk, n_pad=n_pad,
                               n_valid=n, top_k=k, kb_pad=kb_pad)
    grid_spec = pltpu.PrefetchScalarGridSpec(
        num_scalar_prefetch=0,
        grid=(nb,),
        in_specs=[
            pl.BlockSpec((1, f, bn), lambda i: (i, 0, 0)),   # sortvec block
            pl.BlockSpec((1, c, bn), lambda i: (i, 0, 0)),   # input block
            pl.BlockSpec(w0f.shape, lambda i: (0, 0)),       # folded W0 (resident)
            pl.BlockSpec(b0f.shape, lambda i: (0, 0)),       # folded b0
            pl.BlockSpec(w1f.shape, lambda i: (0, 0)),       # folded W1
            pl.BlockSpec(b1f.shape, lambda i: (0, 0)),       # folded b1
            pl.BlockSpec(w2f.shape, lambda i: (0, 0)),       # folded W2
            pl.BlockSpec(b2f.shape, lambda i: (0, 0)),       # folded b2
        ],
        out_specs=(
            pl.BlockSpec((1, c + 1, kb_pad), lambda i: (i, 0, 0)),  # feat slab
            pl.BlockSpec((1, b_blk, 128), lambda i: (i, 0, 0)),     # idx slab
        ),
    )
    feat_slab, idx_slab = pl.pallas_call(
        kernel,
        out_shape=(jax.ShapeDtypeStruct((nb, c + 1, kb_pad), jnp.float32),
                   jax.ShapeDtypeStruct((nb, b_blk, 128), jnp.int32)),
        grid_spec=grid_spec,
        compiler_params=pltpu.CompilerParams(dimension_semantics=("parallel",)),
    )(sv_f, in_f, w0f, b0f, w1f, b1f, w2f, b2f)

    # Kernel feat columns are ordered j*B_blk + b_local; un-permute here.
    feat = (feat_slab[:, :, :kb].reshape(nb, c + 1, k, b_blk)
            .transpose(0, 3, 1, 2)
            .reshape(b_pad, c + 1, k)[:b])
    idx = idx_slab[:, :, :k].reshape(b_pad, k)[:b]
    return feat, idx


def init_params(key, num_feat):
    """Kaiming-normal conv weights, zero bias, default BatchNorm stats."""
    feat_channels = [64, 16, 1]
    in_chans = [num_feat, 64, 16]          # conv0 reduces the num_feat axis
    out_chans = feat_channels
    keys = jax.random.split(key, 3)
    ws, ps = [], []
    for kk, cin, cout in zip(keys, in_chans, out_chans):
        std = np.sqrt(2.0 / cin)           # kaiming_normal_, fan_in, relu gain
        w = jax.random.normal(kk, (cout, cin), jnp.float32) * std
        # columns: [bias, gamma, beta, running_mean, running_var]
        p = jnp.concatenate(
            [jnp.zeros((cout, 1)), jnp.ones((cout, 1)), jnp.zeros((cout, 1)),
             jnp.zeros((cout, 1)), jnp.ones((cout, 1))], axis=1).astype(jnp.float32)
        ws.append(w)
        ps.append(p)
    return ws, ps


def reference_forward(sortvec, inp, ws, ps):
    """Pure-JAX reference of the same forward (inference-mode BN, unfolded)."""
    x = sortvec[:, 0]                                    # [B, F, N]
    h = x
    for w, p in zip(ws, ps):
        z = jnp.einsum("oc,bcn->bon", w, h) + p[:, 0][None, :, None]
        inv = lax.rsqrt(p[:, 4] + BN_EPS)
        z = (z - p[:, 3][None, :, None]) * (p[:, 1] * inv)[None, :, None] \
            + p[:, 2][None, :, None]
        h = jnp.maximum(z, 0.0)
    s = h[:, 0]                                          # [B, N]
    idx = lax.top_k(s, TOP_K)[1].astype(jnp.int32)       # [B, K]
    sorted_input = jnp.take_along_axis(inp, idx[:, None, :], axis=2)
    sorted_score = jnp.take_along_axis(s[:, None, :], idx[:, None, :], axis=2)
    feat = jnp.concatenate([sorted_input, sorted_score], axis=1)
    return feat, idx


if __name__ == "__main__":
    B, NUM_FEAT, N, C = 2, 8, 16, 4      # batch, sortvec feature dim, #points, input feat dim

    key = jax.random.PRNGKey(0)
    k_sv, k_in, k_p = jax.random.split(key, 3)
    sortvec = jax.random.normal(k_sv, (B, 1, NUM_FEAT, N), jnp.float32)   # NCHW
    inp = jax.random.normal(k_in, (B, C, N), jnp.float32)

    (w0, w1, w2), (p0, p1, p2) = init_params(k_p, NUM_FEAT)

    feat, idx = sortnet_forward(sortvec, inp, w0, p0, w1, p1, w2, p2)
    jax.block_until_ready((feat, idx))

    feat_ref, idx_ref = reference_forward(sortvec, inp, [w0, w1, w2], [p0, p1, p2])
    assert feat.shape == (B, C + 1, TOP_K) and idx.shape == (B, TOP_K)
    np.testing.assert_array_equal(np.asarray(idx), np.asarray(idx_ref))
    np.testing.assert_allclose(np.asarray(feat), np.asarray(feat_ref),
                               rtol=1e-2, atol=1e-2)
    print("KERNEL_OK")
</pallas_src>

<mosaic_0001>
module attributes {stable_mosaic.version = 11 : i64} {
  func.func @sortnet_kernel(%arg0: i32, %arg1: memref<1x8x256xf32, #tpu.memory_space<vmem>>, %arg2: memref<1x4x256xf32, #tpu.memory_space<vmem>>, %arg3: memref<64x8xf32, #tpu.memory_space<vmem>>, %arg4: memref<64x1xf32, #tpu.memory_space<vmem>>, %arg5: memref<16x64xf32, #tpu.memory_space<vmem>>, %arg6: memref<16x1xf32, #tpu.memory_space<vmem>>, %arg7: memref<1x16xf32, #tpu.memory_space<vmem>>, %arg8: memref<1x1xf32, #tpu.memory_space<vmem>>, %arg9: memref<1x5x128xf32, #tpu.memory_space<vmem>>, %arg10: memref<1x2x128xi32, #tpu.memory_space<vmem>>) attributes {dimension_semantics = [#tpu.dimension_semantics<parallel>], iteration_bounds = array<i64: 1>, scalar_prefetch = 0 : i64, scratch_operands = 0 : i64, tpu.core_type = #tpu.core_type<tc>, window_params = [{transform_indices = @transform_0, window_bounds = array<i64: 1, 8, 256>}, {transform_indices = @transform_1, window_bounds = array<i64: 1, 4, 256>}, {pipeline_mode = #tpu.pipeline_mode<synchronous>, transform_indices = @transform_2, window_bounds = array<i64: 64, 8>}, {pipeline_mode = #tpu.pipeline_mode<synchronous>, transform_indices = @transform_3, window_bounds = array<i64: 64, 1>}, {pipeline_mode = #tpu.pipeline_mode<synchronous>, transform_indices = @transform_4, window_bounds = array<i64: 16, 64>}, {pipeline_mode = #tpu.pipeline_mode<synchronous>, transform_indices = @transform_5, window_bounds = array<i64: 16, 1>}, {pipeline_mode = #tpu.pipeline_mode<synchronous>, transform_indices = @transform_6, window_bounds = array<i64: 1, 16>}, {pipeline_mode = #tpu.pipeline_mode<synchronous>, transform_indices = @transform_7, window_bounds = array<i64: 1, 1>}, {transform_indices = @transform_8, window_bounds = array<i64: 1, 5, 128>}, {transform_indices = @transform_9, window_bounds = array<i64: 1, 2, 128>}]} {
    %c0 = arith.constant 0 : index
    %c0_0 = arith.constant 0 : index
    %c0_1 = arith.constant 0 : index
    %0 = vector.load %arg1[%c0, %c0_0, %c0_1] : memref<1x8x256xf32, #tpu.memory_space<vmem>>, vector<1x8x256xf32>
    %1 = vector.shape_cast %0 : vector<1x8x256xf32> to vector<8x256xf32>
    %c0_2 = arith.constant 0 : index
    %c0_3 = arith.constant 0 : index
    %c0_4 = arith.constant 0 : index
    %2 = vector.load %arg2[%c0_2, %c0_3, %c0_4] : memref<1x4x256xf32, #tpu.memory_space<vmem>>, vector<1x4x256xf32>
    %3 = vector.shape_cast %2 : vector<1x4x256xf32> to vector<4x256xf32>
    %c0_5 = arith.constant 0 : index
    %c0_6 = arith.constant 0 : index
    %4 = vector.load %arg3[%c0_5, %c0_6] : memref<64x8xf32, #tpu.memory_space<vmem>>, vector<64x8xf32>
    %cst = arith.constant dense<0.000000e+00> : vector<64x256xf32>
    %5 = tpu.matmul %4, %1, %cst {dimension_numbers = #tpu.dot_dimension_numbers<[1], [0], [0], [1], [0, 0, 1, 1], [], []>} : vector<64x8xf32>, vector<8x256xf32>, vector<64x256xf32> -> vector<64x256xf32>
    %c0_7 = arith.constant 0 : index
    %c0_8 = arith.constant 0 : index
    %6 = vector.load %arg4[%c0_7, %c0_8] : memref<64x1xf32, #tpu.memory_space<vmem>>, vector<64x1xf32>
    %7 = vector.broadcast %6 : vector<64x1xf32> to vector<64x256xf32>
    %8 = arith.addf %5, %7 : vector<64x256xf32>
    %cst_9 = arith.constant 0.000000e+00 : f32
    %9 = vector.broadcast %cst_9 : f32 to vector<64x256xf32>
    %10 = arith.maximumf %8, %9 : vector<64x256xf32>
    %c0_10 = arith.constant 0 : index
    %c0_11 = arith.constant 0 : index
    %11 = vector.load %arg5[%c0_10, %c0_11] : memref<16x64xf32, #tpu.memory_space<vmem>>, vector<16x64xf32>
    %cst_12 = arith.constant dense<0.000000e+00> : vector<16x256xf32>
    %12 = tpu.matmul %11, %10, %cst_12 {dimension_numbers = #tpu.dot_dimension_numbers<[1], [0], [0], [1], [0, 0, 1, 1], [], []>} : vector<16x64xf32>, vector<64x256xf32>, vector<16x256xf32> -> vector<16x256xf32>
    %c0_13 = arith.constant 0 : index
    %c0_14 = arith.constant 0 : index
    %13 = vector.load %arg6[%c0_13, %c0_14] : memref<16x1xf32, #tpu.memory_space<vmem>>, vector<16x1xf32>
    %14 = vector.broadcast %13 : vector<16x1xf32> to vector<16x256xf32>
    %15 = arith.addf %12, %14 : vector<16x256xf32>
    %cst_15 = arith.constant 0.000000e+00 : f32
    %16 = vector.broadcast %cst_15 : f32 to vector<16x256xf32>
    %17 = arith.maximumf %15, %16 : vector<16x256xf32>
    %c0_16 = arith.constant 0 : index
    %c0_17 = arith.constant 0 : index
    %18 = vector.load %arg7[%c0_16, %c0_17] : memref<1x16xf32, #tpu.memory_space<vmem>>, vector<1x16xf32>
    %cst_18 = arith.constant dense<0.000000e+00> : vector<1x256xf32>
    %19 = tpu.matmul %18, %17, %cst_18 {dimension_numbers = #tpu.dot_dimension_numbers<[1], [0], [0], [1], [0, 0, 1, 1], [], []>} : vector<1x16xf32>, vector<16x256xf32>, vector<1x256xf32> -> vector<1x256xf32>
    %c0_19 = arith.constant 0 : index
    %c0_20 = arith.constant 0 : index
    %20 = vector.load %arg8[%c0_19, %c0_20] : memref<1x1xf32, #tpu.memory_space<vmem>>, vector<1x1xf32>
    %21 = vector.broadcast %20 : vector<1x1xf32> to vector<1x256xf32>
    %22 = arith.addf %19, %21 : vector<1x256xf32>
    %cst_21 = arith.constant 0.000000e+00 : f32
    %23 = vector.broadcast %cst_21 : f32 to vector<1x256xf32>
    %24 = arith.maximumf %22, %23 : vector<1x256xf32>
    %25 = tpu.concatenate %3, %24 in 0 : vector<4x256xf32>, vector<1x256xf32> -> vector<5x256xf32>
    %26 = vector.shape_cast %25 : vector<5x256xf32> to vector<5x2x128xf32>
    %27 = vector.extract_strided_slice %26 {offsets = [4, 0, 0], sizes = [1, 2, 128], strides = [1, 1, 1]} : vector<5x2x128xf32> to vector<1x2x128xf32>
    %28 = vector.shape_cast %27 : vector<1x2x128xf32> to vector<2x128xf32>
    %29 = tpu.iota {dimensions = array<i32: 1>} : vector<2x128xi32>
    %30 = tpu.iota {dimensions = array<i32: 1>} : vector<2x128xi32>
    %c16_i32 = arith.constant 16 : i32
    %31 = vector.broadcast %c16_i32 : i32 to vector<2x128xi32>
    %32 = arith.cmpi slt, %29, %31 : vector<2x128xi32>
    %cst_22 = arith.constant 0xFF800000 : f32
    %33 = vector.broadcast %cst_22 : f32 to vector<2x128xf32>
    %34 = arith.select %32, %28, %33 : vector<2x128xi1>, vector<2x128xf32>
    %c0_i32 = arith.constant 0 : i32
    %35 = vector.broadcast %c0_i32 : i32 to vector<2x128xi32>
    %cst_23 = arith.constant dense<0xFF800000> : vector<2xf32>
    %36 = vector.multi_reduction <maximumf>, %34, %cst_23 [1] : vector<2x128xf32> to vector<2xf32>
    %37 = vector.shape_cast %36 : vector<2xf32> to vector<2x1xf32>
    %38 = vector.broadcast %37 : vector<2x1xf32> to vector<2x128xf32>
    %39 = arith.cmpf oeq, %34, %38 : vector<2x128xf32>
    %c128_i32 = arith.constant 128 : i32
    %40 = vector.broadcast %c128_i32 : i32 to vector<2x128xi32>
    %41 = arith.select %39, %29, %40 : vector<2x128xi1>, vector<2x128xi32>
    %cst_24 = arith.constant dense<2147483647> : vector<2xi32>
    %42 = vector.multi_reduction <minsi>, %41, %cst_24 [1] : vector<2x128xi32> to vector<2xi32>
    %43 = vector.shape_cast %42 : vector<2xi32> to vector<2x1xi32>
    %44 = vector.broadcast %43 : vector<2x1xi32> to vector<2x128xi32>
    %45 = arith.cmpi eq, %29, %44 : vector<2x128xi32>
    %cst_25 = arith.constant 0xFF800000 : f32
    %46 = vector.broadcast %cst_25 : f32 to vector<2x128xf32>
    %47 = arith.select %45, %46, %34 : vector<2x128xi1>, vector<2x128xf32>
    %c0_i32_26 = arith.constant 0 : i32
    %48 = vector.broadcast %c0_i32_26 : i32 to vector<2x128xi32>
    %49 = arith.cmpi eq, %30, %48 : vector<2x128xi32>
    %50 = vector.shape_cast %43 : vector<2x1xi32> to vector<2x1xi32>
    %51 = vector.broadcast %50 : vector<2x1xi32> to vector<2x128xi32>
    %52 = arith.select %49, %51, %35 : vector<2x128xi1>, vector<2x128xi32>
    %53 = arith.extui %45 : vector<2x128xi1> to vector<2x128xi32>
    %54 = arith.sitofp %53 : vector<2x128xi32> to vector<2x128xf32>
    %55 = vector.shape_cast %54 : vector<2x128xf32> to vector<1x2x128xf32>
    %56 = vector.broadcast %55 : vector<1x2x128xf32> to vector<5x2x128xf32>
    %57 = arith.mulf %26, %56 : vector<5x2x128xf32>
    %cst_27 = arith.constant dense<0.000000e+00> : vector<5x2xf32>
    %58 = vector.multi_reduction <add>, %57, %cst_27 [2] : vector<5x2x128xf32> to vector<5x2xf32>
    %cst_28 = arith.constant dense<0xFF800000> : vector<2xf32>
    %59 = vector.multi_reduction <maximumf>, %47, %cst_28 [1] : vector<2x128xf32> to vector<2xf32>
    %60 = vector.shape_cast %59 : vector<2xf32> to vector<2x1xf32>
    %61 = vector.broadcast %60 : vector<2x1xf32> to vector<2x128xf32>
    %62 = arith.cmpf oeq, %47, %61 : vector<2x128xf32>
    %c128_i32_29 = arith.constant 128 : i32
    %63 = vector.broadcast %c128_i32_29 : i32 to vector<2x128xi32>
    %64 = arith.select %62, %29, %63 : vector<2x128xi1>, vector<2x128xi32>
    %cst_30 = arith.constant dense<2147483647> : vector<2xi32>
    %65 = vector.multi_reduction <minsi>, %64, %cst_30 [1] : vector<2x128xi32> to vector<2xi32>
    %66 = vector.shape_cast %65 : vector<2xi32> to vector<2x1xi32>
    %67 = vector.broadcast %66 : vector<2x1xi32> to vector<2x128xi32>
    %68 = arith.cmpi eq, %29, %67 : vector<2x128xi32>
    %cst_31 = arith.constant 0xFF800000 : f32
    %69 = vector.broadcast %cst_31 : f32 to vector<2x128xf32>
    %70 = arith.select %68, %69, %47 : vector<2x128xi1>, vector<2x128xf32>
    %c1_i32 = arith.constant 1 : i32
    %71 = vector.broadcast %c1_i32 : i32 to vector<2x128xi32>
    %72 = arith.cmpi eq, %30, %71 : vector<2x128xi32>
    %73 = vector.shape_cast %66 : vector<2x1xi32> to vector<2x1xi32>
    %74 = vector.broadcast %73 : vector<2x1xi32> to vector<2x128xi32>
    %75 = arith.select %72, %74, %52 : vector<2x128xi1>, vector<2x128xi32>
    %76 = arith.extui %68 : vector<2x128xi1> to vector<2x128xi32>
    %77 = arith.sitofp %76 : vector<2x128xi32> to vector<2x128xf32>
    %78 = vector.shape_cast %77 : vector<2x128xf32> to vector<1x2x128xf32>
    %79 = vector.broadcast %78 : vector<1x2x128xf32> to vector<5x2x128xf32>
    %80 = arith.mulf %26, %79 : vector<5x2x128xf32>
    %cst_32 = arith.constant dense<0.000000e+00> : vector<5x2xf32>
    %81 = vector.multi_reduction <add>, %80, %cst_32 [2] : vector<5x2x128xf32> to vector<5x2xf32>
    %cst_33 = arith.constant dense<0xFF800000> : vector<2xf32>
    %82 = vector.multi_reduction <maximumf>, %70, %cst_33 [1] : vector<2x128xf32> to vector<2xf32>
    %83 = vector.shape_cast %82 : vector<2xf32> to vector<2x1xf32>
    %84 = vector.broadcast %83 : vector<2x1xf32> to vector<2x128xf32>
    %85 = arith.cmpf oeq, %70, %84 : vector<2x128xf32>
    %c128_i32_34 = arith.constant 128 : i32
    %86 = vector.broadcast %c128_i32_34 : i32 to vector<2x128xi32>
    %87 = arith.select %85, %29, %86 : vector<2x128xi1>, vector<2x128xi32>
    %cst_35 = arith.constant dense<2147483647> : vector<2xi32>
    %88 = vector.multi_reduction <minsi>, %87, %cst_35 [1] : vector<2x128xi32> to vector<2xi32>
    %89 = vector.shape_cast %88 : vector<2xi32> to vector<2x1xi32>
    %90 = vector.broadcast %89 : vector<2x1xi32> to vector<2x128xi32>
    %91 = arith.cmpi eq, %29, %90 : vector<2x128xi32>
    %cst_36 = arith.constant 0xFF800000 : f32
    %92 = vector.broadcast %cst_36 : f32 to vector<2x128xf32>
    %93 = arith.select %91, %92, %70 : vector<2x128xi1>, vector<2x128xf32>
    %c2_i32 = arith.constant 2 : i32
    %94 = vector.broadcast %c2_i32 : i32 to vector<2x128xi32>
    %95 = arith.cmpi eq, %30, %94 : vector<2x128xi32>
    %96 = vector.shape_cast %89 : vector<2x1xi32> to vector<2x1xi32>
    %97 = vector.broadcast %96 : vector<2x1xi32> to vector<2x128xi32>
    %98 = arith.select %95, %97, %75 : vector<2x128xi1>, vector<2x128xi32>
    %99 = arith.extui %91 : vector<2x128xi1> to vector<2x128xi32>
    %100 = arith.sitofp %99 : vector<2x128xi32> to vector<2x128xf32>
    %101 = vector.shape_cast %100 : vector<2x128xf32> to vector<1x2x128xf32>
    %102 = vector.broadcast %101 : vector<1x2x128xf32> to vector<5x2x128xf32>
    %103 = arith.mulf %26, %102 : vector<5x2x128xf32>
    %cst_37 = arith.constant dense<0.000000e+00> : vector<5x2xf32>
    %104 = vector.multi_reduction <add>, %103, %cst_37 [2] : vector<5x2x128xf32> to vector<5x2xf32>
    %cst_38 = arith.constant dense<0xFF800000> : vector<2xf32>
    %105 = vector.multi_reduction <maximumf>, %93, %cst_38 [1] : vector<2x128xf32> to vector<2xf32>
    %106 = vector.shape_cast %105 : vector<2xf32> to vector<2x1xf32>
    %107 = vector.broadcast %106 : vector<2x1xf32> to vector<2x128xf32>
    %108 = arith.cmpf oeq, %93, %107 : vector<2x128xf32>
    %c128_i32_39 = arith.constant 128 : i32
    %109 = vector.broadcast %c128_i32_39 : i32 to vector<2x128xi32>
    %110 = arith.select %108, %29, %109 : vector<2x128xi1>, vector<2x128xi32>
    %cst_40 = arith.constant dense<2147483647> : vector<2xi32>
    %111 = vector.multi_reduction <minsi>, %110, %cst_40 [1] : vector<2x128xi32> to vector<2xi32>
    %112 = vector.shape_cast %111 : vector<2xi32> to vector<2x1xi32>
    %113 = vector.broadcast %112 : vector<2x1xi32> to vector<2x128xi32>
    %114 = arith.cmpi eq, %29, %113 : vector<2x128xi32>
    %cst_41 = arith.constant 0xFF800000 : f32
    %115 = vector.broadcast %cst_41 : f32 to vector<2x128xf32>
    %116 = arith.select %114, %115, %93 : vector<2x128xi1>, vector<2x128xf32>
    %c3_i32 = arith.constant 3 : i32
    %117 = vector.broadcast %c3_i32 : i32 to vector<2x128xi32>
    %118 = arith.cmpi eq, %30, %117 : vector<2x128xi32>
    %119 = vector.shape_cast %112 : vector<2x1xi32> to vector<2x1xi32>
    %120 = vector.broadcast %119 : vector<2x1xi32> to vector<2x128xi32>
    %121 = arith.select %118, %120, %98 : vector<2x128xi1>, vector<2x128xi32>
    %122 = arith.extui %114 : vector<2x128xi1> to vector<2x128xi32>
    %123 = arith.sitofp %122 : vector<2x128xi32> to vector<2x128xf32>
    %124 = vector.shape_cast %123 : vector<2x128xf32> to vector<1x2x128xf32>
    %125 = vector.broadcast %124 : vector<1x2x128xf32> to vector<5x2x128xf32>
    %126 = arith.mulf %26, %125 : vector<5x2x128xf32>
    %cst_42 = arith.constant dense<0.000000e+00> : vector<5x2xf32>
    %127 = vector.multi_reduction <add>, %126, %cst_42 [2] : vector<5x2x128xf32> to vector<5x2xf32>
    %cst_43 = arith.constant dense<0xFF800000> : vector<2xf32>
    %128 = vector.multi_reduction <maximumf>, %116, %cst_43 [1] : vector<2x128xf32> to vector<2xf32>
    %129 = vector.shape_cast %128 : vector<2xf32> to vector<2x1xf32>
    %130 = vector.broadcast %129 : vector<2x1xf32> to vector<2x128xf32>
    %131 = arith.cmpf oeq, %116, %130 : vector<2x128xf32>
    %c128_i32_44 = arith.constant 128 : i32
    %132 = vector.broadcast %c128_i32_44 : i32 to vector<2x128xi32>
    %133 = arith.select %131, %29, %132 : vector<2x128xi1>, vector<2x128xi32>
    %cst_45 = arith.constant dense<2147483647> : vector<2xi32>
    %134 = vector.multi_reduction <minsi>, %133, %cst_45 [1] : vector<2x128xi32> to vector<2xi32>
    %135 = vector.shape_cast %134 : vector<2xi32> to vector<2x1xi32>
    %136 = vector.broadcast %135 : vector<2x1xi32> to vector<2x128xi32>
    %137 = arith.cmpi eq, %29, %136 : vector<2x128xi32>
    %c4_i32 = arith.constant 4 : i32
    %138 = vector.broadcast %c4_i32 : i32 to vector<2x128xi32>
    %139 = arith.cmpi eq, %30, %138 : vector<2x128xi32>
    %140 = vector.shape_cast %135 : vector<2x1xi32> to vector<2x1xi32>
    %141 = vector.broadcast %140 : vector<2x1xi32> to vector<2x128xi32>
    %142 = arith.select %139, %141, %121 : vector<2x128xi1>, vector<2x128xi32>
    %143 = arith.extui %137 : vector<2x128xi1> to vector<2x128xi32>
    %144 = arith.sitofp %143 : vector<2x128xi32> to vector<2x128xf32>
    %145 = vector.shape_cast %144 : vector<2x128xf32> to vector<1x2x128xf32>
    %146 = vector.broadcast %145 : vector<1x2x128xf32> to vector<5x2x128xf32>
    %147 = arith.mulf %26, %146 : vector<5x2x128xf32>
    %cst_46 = arith.constant dense<0.000000e+00> : vector<5x2xf32>
    %148 = vector.multi_reduction <add>, %147, %cst_46 [2] : vector<5x2x128xf32> to vector<5x2xf32>
    %cst_47 = arith.constant 0.000000e+00 : f32
    %149 = vector.broadcast %cst_47 : f32 to vector<5x118xf32>
    %150 = tpu.concatenate %58, %81, %104, %127, %148, %149 in 1 : vector<5x2xf32>, vector<5x2xf32>, vector<5x2xf32>, vector<5x2xf32>, vector<5x2xf32>, vector<5x118xf32> -> vector<5x128xf32>
    %c0_48 = arith.constant 0 : index
    %c0_49 = arith.constant 0 : index
    %c0_50 = arith.constant 0 : index
    %151 = vector.load %arg9[%c0_48, %c0_49, %c0_50] : memref<1x5x128xf32, #tpu.memory_space<vmem>>, vector<1x5x128xf32>
    %152 = vector.shape_cast %151 : vector<1x5x128xf32> to vector<5x128xf32>
    %153 = vector.shape_cast %150 : vector<5x128xf32> to vector<1x5x128xf32>
    tpu.vector_store %arg9[%c0_48, %c0_49, %c0_50], %153 {strides = array<i32>} : memref<1x5x128xf32, #tpu.memory_space<vmem>>, vector<1x5x128xf32>,
    %c0_51 = arith.constant 0 : index
    %c0_52 = arith.constant 0 : index
    %c0_53 = arith.constant 0 : index
    %154 = vector.load %arg10[%c0_51, %c0_52, %c0_53] : memref<1x2x128xi32, #tpu.memory_space<vmem>>, vector<1x2x128xi32>
    %155 = vector.shape_cast %154 : vector<1x2x128xi32> to vector<2x128xi32>
    %156 = vector.shape_cast %142 : vector<2x128xi32> to vector<1x2x128xi32>
    tpu.vector_store %arg10[%c0_51, %c0_52, %c0_53], %156 {strides = array<i32>} : memref<1x2x128xi32, #tpu.memory_space<vmem>>, vector<1x2x128xi32>,
    return
  }
  func.func @transform_0(%arg0: i32) -> (i32, i32, i32) {
    %c0_i32 = arith.constant 0 : i32
    %c0_i32_0 = arith.constant 0 : i32
    %c0_i32_1 = arith.constant 0 : i32
    return %arg0, %c0_i32, %c0_i32_0 : i32, i32, i32
  }
  func.func @transform_1(%arg0: i32) -> (i32, i32, i32) {
    %c0_i32 = arith.constant 0 : i32
    %c0_i32_0 = arith.constant 0 : i32
    %c0_i32_1 = arith.constant 0 : i32
    return %arg0, %c0_i32, %c0_i32_0 : i32, i32, i32
  }
  func.func @transform_2(%arg0: i32) -> (i32, i32) {
    %c0_i32 = arith.constant 0 : i32
    %c0_i32_0 = arith.constant 0 : i32
    %c0_i32_1 = arith.constant 0 : i32
    return %c0_i32, %c0_i32_0 : i32, i32
  }
  func.func @transform_3(%arg0: i32) -> (i32, i32) {
    %c0_i32 = arith.constant 0 : i32
    %c0_i32_0 = arith.constant 0 : i32
    %c0_i32_1 = arith.constant 0 : i32
    return %c0_i32, %c0_i32_0 : i32, i32
  }
  func.func @transform_4(%arg0: i32) -> (i32, i32) {
    %c0_i32 = arith.constant 0 : i32
    %c0_i32_0 = arith.constant 0 : i32
    %c0_i32_1 = arith.constant 0 : i32
    return %c0_i32, %c0_i32_0 : i32, i32
  }
  func.func @transform_5(%arg0: i32) -> (i32, i32) {
    %c0_i32 = arith.constant 0 : i32
    %c0_i32_0 = arith.constant 0 : i32
    %c0_i32_1 = arith.constant 0 : i32
    return %c0_i32, %c0_i32_0 : i32, i32
  }
  func.func @transform_6(%arg0: i32) -> (i32, i32) {
    %c0_i32 = arith.constant 0 : i32
    %c0_i32_0 = arith.constant 0 : i32
    %c0_i32_1 = arith.constant 0 : i32
    return %c0_i32, %c0_i32_0 : i32, i32
  }
  func.func @transform_7(%arg0: i32) -> (i32, i32) {
    %c0_i32 = arith.constant 0 : i32
    %c0_i32_0 = arith.constant 0 : i32
    %c0_i32_1 = arith.constant 0 : i32
    return %c0_i32, %c0_i32_0 : i32, i32
  }
  func.func @transform_8(%arg0: i32) -> (i32, i32, i32) {
    %c0_i32 = arith.constant 0 : i32
    %c0_i32_0 = arith.constant 0 : i32
    %c0_i32_1 = arith.constant 0 : i32
    return %arg0, %c0_i32, %c0_i32_0 : i32, i32, i32
  }
  func.func @transform_9(%arg0: i32) -> (i32, i32, i32) {
    %c0_i32 = arith.constant 0 : i32
    %c0_i32_0 = arith.constant 0 : i32
    %c0_i32_1 = arith.constant 0 : i32
    return %arg0, %c0_i32, %c0_i32_0 : i32, i32, i32
  }
}

</mosaic_0001>

<llo_original>
// kernel: sortnet_forward.1
$region0: #{sortnet_forward.1}
  #allocation0 [shape = 'u32[]', space=smem, size = 0x4, offset = 0x4, fixed_abs, tag = 'smem constant byte address 0x4 - core index']
  #allocation1 [shape = 'u32[144,128]{1,0:T(1,128)}', space=vmem, size = 0x12000, scoped, tag = 'internal scratch']
  #allocation2 [shape = 'f32[1,1]{1,0:T(1,128)S(1)}', space=vmem, size = 0x200, scoped, tag = 'scoped memory for sortnet_forward.1']
  %s0 = inlined_call_operand.vmem [shape: f32[1,8,256], index: 0, kind: input, shape index: {}]
  %s1 = inlined_call_operand.vmem [shape: f32[1,4,256], index: 1, kind: input, shape index: {}]
  %s2 = inlined_call_operand.vmem [shape: f32[64,8], index: 2, kind: input, shape index: {}]
  %s3 = inlined_call_operand.vmem [shape: f32[64,1], index: 3, kind: input, shape index: {}]
  %s4 = inlined_call_operand.vmem [shape: f32[16,64], index: 4, kind: input, shape index: {}]
  %s5 = inlined_call_operand.vmem [shape: f32[16,1], index: 5, kind: input, shape index: {}]
  %s6 = inlined_call_operand.vmem [shape: f32[1,16], index: 6, kind: input, shape index: {}]
  %s7 = inlined_call_operand.<no memory space> [shape: f32[1,1], index: 7, kind: input, shape index: {}]
  %s8 = inlined_call_operand.vmem [shape: f32[1,5,128], index: 8, kind: output, shape index: {0}]
  %s9 = inlined_call_operand.vmem [shape: s32[1,2,128], index: 9, kind: output, shape index: {1}]
  %10 = xla_tuple %s8, %s9
  %s11 = sld [smem:[#allocation0]]
  $region50: #{sortnet_forward.1} parent=0
    _
  %s13 = ssub.s32 1, %s11
  %s14 = scalar_select 0, %s13, %s11
  %v15 = vstv %s7
  %16 = vst [vmem:[#allocation2] sm:$0x1] %v15
  // Predicated region
  $region2: #{sortnet_forward.1} parent=0 // pred_check
    _
  $region3: #{sortnet_forward.1} parent=0 // pred_check_branch
    %18 = sbr.rel (0) target = $region5
  $region4: #{sortnet_forward.1} parent=0 // pred_region
    _
  $region5: #{sortnet_forward.1} parent=0 // pred_fallthru
    _
  // Predicated region
  $region6: #{sortnet_forward.1} parent=0 // pred_check
    _
  $region7: #{sortnet_forward.1} parent=0 // pred_check_branch
    %20 = sbr.rel (0) target = $region9
  $region8: #{sortnet_forward.1} parent=0 // pred_region
    _
  $region9: #{sortnet_forward.1} parent=0 // pred_fallthru
    _
  // Predicated region
  $region10: #{sortnet_forward.1} parent=0 // pred_check
    _
  $region11: #{sortnet_forward.1} parent=0 // pred_check_branch
    %22 = sbr.rel (0) target = $region13
  $region12: #{sortnet_forward.1} parent=0 // pred_region
    _
  $region13: #{sortnet_forward.1} parent=0 // pred_fallthru
    _
  // Predicated region
  $region14: #{sortnet_forward.1} parent=0 // pred_check
    _
  $region15: #{sortnet_forward.1} parent=0 // pred_check_branch
    %24 = sbr.rel (0) target = $region17
  $region16: #{sortnet_forward.1} parent=0 // pred_region
    _
  $region17: #{sortnet_forward.1} parent=0 // pred_fallthru
    _
  // Predicated region
  $region18: #{sortnet_forward.1} parent=0 // pred_check
    _
  $region19: #{sortnet_forward.1} parent=0 // pred_check_branch
    %26 = sbr.rel (0) target = $region21
  $region20: #{sortnet_forward.1} parent=0 // pred_region
    _
  $region21: #{sortnet_forward.1} parent=0 // pred_fallthru
    _
  // Predicated region
  $region22: #{sortnet_forward.1} parent=0 // pred_check
    _
  $region23: #{sortnet_forward.1} parent=0 // pred_check_branch
    %28 = sbr.rel (0) target = $region25
  $region24: #{sortnet_forward.1} parent=0 // pred_region
    _
  $region25: #{sortnet_forward.1} parent=0 // pred_fallthru
    _
  // Predicated region
  $region26: #{sortnet_forward.1} parent=0 // pred_check
    _
  $region27: #{sortnet_forward.1} parent=0 // pred_check_branch
    %30 = sbr.rel (0) target = $region29
  $region28: #{sortnet_forward.1} parent=0 // pred_region
    _
  $region29: #{sortnet_forward.1} parent=0 // pred_fallthru
    _
  // Predicated region
  $region30: #{sortnet_forward.1} parent=0 // pred_check
    _
  $region31: #{sortnet_forward.1} parent=0 // pred_check_branch
    %32 = sbr.rel (0) target = $region33
  $region32: #{sortnet_forward.1} parent=0 // pred_region
    _
  $region33: #{sortnet_forward.1} parent=0 // pred_fallthru
    _
  %v33 = vld [vmem:[%s0] sm:$0xff]
  %v34 = vld [vmem:[%s0 + $0x8] sm:$0xff]
  %v35 = vld [vmem:[%s1] sm:$0xff]
  %v36 = vld [vmem:[%s2] sm:$0xff]
  %v37 = vld [vmem:[%s2 + $0x8] sm:$0xff]
  %v38 = vld [vmem:[%s2 + $0x10] sm:$0xff]
  %v39 = vld [vmem:[%s2 + $0x18] sm:$0xff]
  %v40 = vld [vmem:[%s2 + $0x20] sm:$0xff]
  %v41 = vld [vmem:[%s2 + $0x28] sm:$0xff]
  %v42 = vld [vmem:[%s2 + $0x30] sm:$0xff]
  %v43 = vld [vmem:[%s2 + $0x38] sm:$0xff]
  %v44 = vld [vmem:[%s3] sm:$0xff]
  %v45 = vld [vmem:[%s3 + $0x8] sm:$0xff]
  %v46 = vld [vmem:[%s3 + $0x10] sm:$0xff]
  %v47 = vld [vmem:[%s3 + $0x18] sm:$0xff]
  %v48 = vld [vmem:[%s3 + $0x20] sm:$0xff]
  %v49 = vld [vmem:[%s3 + $0x28] sm:$0xff]
  %v50 = vld [vmem:[%s3 + $0x30] sm:$0xff]
  %v51 = vld [vmem:[%s3 + $0x38] sm:$0xff]
  %53 = vset.pattern.permute.xlu0 0
  %54 = vperm.xlu0 %53, %v44
  %v55 = vpop.permute.xlu0 %54
  %58 = vset.pattern.permute.xlu0 0
  %59 = vperm.xlu0 %58, %v45
  %v60 = vpop.permute.xlu0 %59
  %63 = vset.pattern.permute.xlu0 0
  %64 = vperm.xlu0 %63, %v46
  %v65 = vpop.permute.xlu0 %64
  %68 = vset.pattern.permute.xlu0 0
  %69 = vperm.xlu0 %68, %v47
  %v70 = vpop.permute.xlu0 %69
  %73 = vset.pattern.permute.xlu0 0
  %74 = vperm.xlu0 %73, %v48
  %v75 = vpop.permute.xlu0 %74
  %78 = vset.pattern.permute.xlu0 0
  %79 = vperm.xlu0 %78, %v49
  %v80 = vpop.permute.xlu0 %79
  %83 = vset.pattern.permute.xlu0 0
  %84 = vperm.xlu0 %83, %v50
  %v85 = vpop.permute.xlu0 %84
  %88 = vset.pattern.permute.xlu0 0
  %89 = vperm.xlu0 %88, %v51
  %v90 = vpop.permute.xlu0 %89
  %vm92 = vcmask 64512
  %v94 = vsel %vm92, %v36, 0
  %v97 = vsel %vm92, %v37, 0
  %v100 = vsel %vm92, %v38, 0
  %v103 = vsel %vm92, %v39, 0
  %v106 = vsel %vm92, %v40, 0
  %v109 = vsel %vm92, %v41, 0
  %v112 = vsel %vm92, %v42, 0
  %v115 = vsel %vm92, %v43, 0
  %117 = vmatprep.subr.mxu0 %v34
  %118 = vmatpush1.msra.mxu0 %v33
  %119 = vmatprep.subr.mxu0 0.0
  %120 = vmatpush1.msra.mxu0 0.0
  %121 = vmatprep.subr.mxu0 0.0
  %122 = vmatpush1.msra.mxu0 0.0
  %123 = vmatprep.subr.mxu0 0.0
  %124 = vmatpush1.msra.mxu0 0.0
  %125 = vmatprep.subr.mxu0 0.0
  %126 = vmatpush1.msra.mxu0 0.0
  %127 = vmatprep.subr.mxu0 0.0
  %128 = vmatpush1.msra.mxu0 0.0
  %129 = vmatprep.subr.mxu0 0.0
  %130 = vmatpush1.msra.mxu0 0.0
  %131 = vmatprep.subr.mxu0 0.0
  %132 = vmatpush1.msra.mxu0 0.0
  %133 = vmatprep.subr.mxu0 0.0
  %134 = vmatpush1.msra.mxu0 0.0
  %135 = vmatprep.subr.mxu0 0.0
  %136 = vmatpush1.msra.mxu0 0.0
  %137 = vmatprep.subr.mxu0 0.0
  %138 = vmatpush1.msra.mxu0 0.0
  %139 = vmatprep.subr.mxu0 0.0
  %140 = vmatpush1.msra.mxu0 0.0
  %141 = vmatprep.subr.mxu0 0.0
  %142 = vmatpush1.msra.mxu0 0.0
  %143 = vmatprep.subr.mxu0 0.0
  %144 = vmatpush1.msra.mxu0 0.0
  %145 = vmatprep.subr.mxu0 0.0
  %146 = vmatpush1.msra.mxu0 0.0
  %147 = vmatprep.subr.mxu0 0.0
  %148 = vmatpush1.msra.mxu0 0.0
  %149 = vmatprep.subr.mxu0 0.0
  %150 = vmatpush1.msra.mxu0 0.0
  %151 = vmatprep.subr.mxu0 0.0
  %152 = vmatpush1.msra.mxu0 0.0
  %153 = vmatprep.subr.mxu0 0.0
  %154 = vmatpush1.msra.mxu0 0.0
  %155 = vmatprep.subr.mxu0 0.0
  %156 = vmatpush1.msra.mxu0 0.0
  %157 = vmatprep.subr.mxu0 0.0
  %158 = vmatpush1.msra.mxu0 0.0
  %159 = vmatprep.subr.mxu0 0.0
  %160 = vmatpush1.msra.mxu0 0.0
  %161 = vmatprep.subr.mxu0 0.0
  %162 = vmatpush1.msra.mxu0 0.0
  %163 = vmatprep.subr.mxu0 0.0
  %164 = vmatpush1.msra.mxu0 0.0
  %165 = vmatprep.subr.mxu0 0.0
  %166 = vmatpush1.msra.mxu0 0.0
  %167 = vmatprep.subr.mxu0 0.0
  %168 = vmatpush1.msra.mxu0 0.0
  %169 = vmatprep.subr.mxu0 0.0
  %170 = vmatpush1.msra.mxu0 0.0
  %171 = vmatprep.subr.mxu0 0.0
  %172 = vmatpush1.msra.mxu0 0.0
  %173 = vmatprep.subr.mxu0 0.0
  %174 = vmatpush1.msra.mxu0 0.0
  %175 = vmatprep.subr.mxu0 0.0
  %176 = vmatpush1.msra.mxu0 0.0
  %177 = vmatprep.subr.mxu0 0.0
  %178 = vmatpush1.msra.mxu0 0.0
  %179 = vmatprep.subr.mxu0 0.0
  %180 = vmatpush1.msra.mxu0 0.0
  %181 = vmatprep.mubr.f32.mxu0 0.0
  %182 = vmatmul.mubr.f32.gmra.mrb[0].mxu0 %v94
  %v183 = vpop.f32.mrb[0].mxu0
  %v184 = vadd.f32 %v55, %v183
  %v185 = vpop.f32.mrb[0].mxu0
  %v186 = vadd.f32 %v55, %v185
  %187 = vmatprep.mubr.f32.mxu0 0.0
  %188 = vmatmul.mubr.f32.gmra.mrb[0].mxu0 %v97
  %v189 = vpop.f32.mrb[0].mxu0
  %v190 = vadd.f32 %v60, %v189
  %v191 = vpop.f32.mrb[0].mxu0
  %v192 = vadd.f32 %v60, %v191
  %193 = vmatprep.mubr.f32.mxu0 0.0
  %194 = vmatmul.mubr.f32.gmra.mrb[0].mxu0 %v100
  %v195 = vpop.f32.mrb[0].mxu0
  %v196 = vadd.f32 %v65, %v195
  %v197 = vpop.f32.mrb[0].mxu0
  %v198 = vadd.f32 %v65, %v197
  %199 = vmatprep.mubr.f32.mxu0 0.0
  %200 = vmatmul.mubr.f32.gmra.mrb[0].mxu0 %v103
  %v201 = vpop.f32.mrb[0].mxu0
  %v202 = vadd.f32 %v70, %v201
  %v203 = vpop.f32.mrb[0].mxu0
  %v204 = vadd.f32 %v70, %v203
  %205 = vmatprep.mubr.f32.mxu0 0.0
  %206 = vmatmul.mubr.f32.gmra.mrb[0].mxu0 %v106
  %v207 = vpop.f32.mrb[0].mxu0
  %v208 = vadd.f32 %v75, %v207
  %v209 = vpop.f32.mrb[0].mxu0
  %v210 = vadd.f32 %v75, %v209
  %211 = vmatprep.mubr.f32.mxu0 0.0
  %212 = vmatmul.mubr.f32.gmra.mrb[0].mxu0 %v109
  %v213 = vpop.f32.mrb[0].mxu0
  %v214 = vadd.f32 %v80, %v213
  %v215 = vpop.f32.mrb[0].mxu0
  %v216 = vadd.f32 %v80, %v215
  %217 = vmatprep.mubr.f32.mxu0 0.0
  %218 = vmatmul.mubr.f32.gmra.mrb[0].mxu0 %v112
  %v219 = vpop.f32.mrb[0].mxu0
  %v220 = vadd.f32 %v85, %v219
  %v221 = vpop.f32.mrb[0].mxu0
  %v222 = vadd.f32 %v85, %v221
  %223 = vmatprep.mubr.f32.mxu0 0.0
  %224 = vmatmul.mubr.f32.gmra.mrb[0].mxu0 %v115
  %v225 = vpop.f32.mrb[0].mxu0
  %v226 = vadd.f32 %v90, %v225
  %v227 = vpop.f32.mrb[0].mxu0
  %v228 = vadd.f32 %v90, %v227
  %229 = vdwg.mxu0
  %v230 = vmax.f32 %v184, 0.0
  %v231 = vmax.f32 %v186, 0.0
  %v232 = vmax.f32 %v190, 0.0
  %v233 = vmax.f32 %v192, 0.0
  %v234 = vmax.f32 %v196, 0.0
  %v235 = vmax.f32 %v198, 0.0
  %v236 = vmax.f32 %v202, 0.0
  %v237 = vmax.f32 %v204, 0.0
  %v238 = vmax.f32 %v208, 0.0
  %v239 = vmax.f32 %v210, 0.0
  %v240 = vmax.f32 %v214, 0.0
  %v241 = vmax.f32 %v216, 0.0
  %v242 = vmax.f32 %v220, 0.0
  %v243 = vmax.f32 %v222, 0.0
  %v244 = vmax.f32 %v226, 0.0
  %v245 = vmax.f32 %v228, 0.0
  %v246 = vld [vmem:[%s4] sm:$0xff]
  %v247 = vld [vmem:[%s4 + $0x8] sm:$0xff]
  %v248 = vld [vmem:[%s5] sm:$0xff]
  %v249 = vld [vmem:[%s5 + $0x8] sm:$0xff]
  %251 = vset.pattern.permute.xlu0 0
  %252 = vperm.xlu0 %251, %v248
  %v253 = vpop.permute.xlu0 %252
  %256 = vset.pattern.permute.xlu0 0
  %257 = vperm.xlu0 %256, %v249
  %v258 = vpop.permute.xlu0 %257
  %vm260 = vcmask 523264
  %v262 = vsel %vm260, %v246, 0
  %v265 = vsel %vm260, %v247, 0
  %267 = vmatprep.subr.mxu0 %v231
  %268 = vmatpush1.msra.mxu0 %v230
  %269 = vmatprep.subr.mxu0 %v233
  %270 = vmatpush1.msra.mxu0 %v232
  %271 = vmatprep.subr.mxu0 %v235
  %272 = vmatpush1.msra.mxu0 %v234
  %273 = vmatprep.subr.mxu0 %v237
  %274 = vmatpush1.msra.mxu0 %v236
  %275 = vmatprep.subr.mxu0 %v239
  %276 = vmatpush1.msra.mxu0 %v238
  %277 = vmatprep.subr.mxu0 %v241
  %278 = vmatpush1.msra.mxu0 %v240
  %279 = vmatprep.subr.mxu0 %v243
  %280 = vmatpush1.msra.mxu0 %v242
  %281 = vmatprep.subr.mxu0 %v245
  %282 = vmatpush1.msra.mxu0 %v244
  %283 = vmatprep.subr.mxu0 0.0
  %284 = vmatpush1.msra.mxu0 0.0
  %285 = vmatprep.subr.mxu0 0.0
  %286 = vmatpush1.msra.mxu0 0.0
  %287 = vmatprep.subr.mxu0 0.0
  %288 = vmatpush1.msra.mxu0 0.0
  %289 = vmatprep.subr.mxu0 0.0
  %290 = vmatpush1.msra.mxu0 0.0
  %291 = vmatprep.subr.mxu0 0.0
  %292 = vmatpush1.msra.mxu0 0.0
  %293 = vmatprep.subr.mxu0 0.0
  %294 = vmatpush1.msra.mxu0 0.0
  %295 = vmatprep.subr.mxu0 0.0
  %296 = vmatpush1.msra.mxu0 0.0
  %297 = vmatprep.subr.mxu0 0.0
  %298 = vmatpush1.msra.mxu0 0.0
  %299 = vmatprep.subr.mxu0 0.0
  %300 = vmatpush1.msra.mxu0 0.0
  %301 = vmatprep.subr.mxu0 0.0
  %302 = vmatpush1.msra.mxu0 0.0
  %303 = vmatprep.subr.mxu0 0.0
  %304 = vmatpush1.msra.mxu0 0.0
  %305 = vmatprep.subr.mxu0 0.0
  %306 = vmatpush1.msra.mxu0 0.0
  %307 = vmatprep.subr.mxu0 0.0
  %308 = vmatpush1.msra.mxu0 0.0
  %309 = vmatprep.subr.mxu0 0.0
  %310 = vmatpush1.msra.mxu0 0.0
  %311 = vmatprep.subr.mxu0 0.0
  %312 = vmatpush1.msra.mxu0 0.0
  %313 = vmatprep.subr.mxu0 0.0
  %314 = vmatpush1.msra.mxu0 0.0
  %315 = vmatprep.subr.mxu0 0.0
  %316 = vmatpush1.msra.mxu0 0.0
  %317 = vmatprep.subr.mxu0 0.0
  %318 = vmatpush1.msra.mxu0 0.0
  %319 = vmatprep.subr.mxu0 0.0
  %320 = vmatpush1.msra.mxu0 0.0
  %321 = vmatprep.subr.mxu0 0.0
  %322 = vmatpush1.msra.mxu0 0.0
  %323 = vmatprep.subr.mxu0 0.0
  %324 = vmatpush1.msra.mxu0 0.0
  %325 = vmatprep.subr.mxu0 0.0
  %326 = vmatpush1.msra.mxu0 0.0
  %327 = vmatprep.subr.mxu0 0.0
  %328 = vmatpush1.msra.mxu0 0.0
  %329 = vmatprep.subr.mxu0 0.0
  %330 = vmatpush1.msra.mxu0 0.0
  %331 = vmatprep.mubr.f32.mxu0 0.0
  %332 = vmatmul.mubr.f32.gmra.mrb[0].mxu0 %v262
  %v333 = vpop.f32.mrb[0].mxu0
  %v334 = vadd.f32 %v253, %v333
  %v335 = vpop.f32.mrb[0].mxu0
  %v336 = vadd.f32 %v253, %v335
  %337 = vmatprep.mubr.f32.mxu0 0.0
  %338 = vmatmul.mubr.f32.gmra.mrb[0].mxu0 %v265
  %v339 = vpop.f32.mrb[0].mxu0
  %v340 = vadd.f32 %v258, %v339
  %v341 = vpop.f32.mrb[0].mxu0
  %v342 = vadd.f32 %v258, %v341
  %343 = vdwg.mxu0
  %v344 = vmax.f32 %v334, 0.0
  %v345 = vmax.f32 %v336, 0.0
  %v346 = vmax.f32 %v340, 0.0
  %v347 = vmax.f32 %v342, 0.0
  %v348 = vld [vmem:[%s6] sm:$0x1]
  %v349 = vld [vmem:[#allocation2] sm:$0x1]
  %351 = vset.pattern.permute.xlu0 0
  %352 = vperm.xlu0 %351, %v349
  %v353 = vpop.permute.xlu0 %352
  %v355 = vlaneseq
  %v356 = vshrl.u32 %v355, 7
  %v357 = vsub.s32 0, %v356
  %v358 = vrot.slane %v353, %v357
  %vm359 = vcmask 130048
  %v361 = vsel %vm359, %v348, 0
  %363 = vmatprep.subr.mxu0 %v345
  %364 = vmatpush1.msra.mxu0 %v344
  %365 = vmatprep.subr.mxu0 %v347
  %366 = vmatpush1.msra.mxu0 %v346
  %367 = vmatprep.subr.mxu0 0.0
  %368 = vmatpush1.msra.mxu0 0.0
  %369 = vmatprep.subr.mxu0 0.0
  %370 = vmatpush1.msra.mxu0 0.0
  %371 = vmatprep.subr.mxu0 0.0
  %372 = vmatpush1.msra.mxu0 0.0
  %373 = vmatprep.subr.mxu0 0.0
  %374 = vmatpush1.msra.mxu0 0.0
  %375 = vmatprep.subr.mxu0 0.0
  %376 = vmatpush1.msra.mxu0 0.0
  %377 = vmatprep.subr.mxu0 0.0
  %378 = vmatpush1.msra.mxu0 0.0
  %379 = vmatprep.subr.mxu0 0.0
  %380 = vmatpush1.msra.mxu0 0.0
  %381 = vmatprep.subr.mxu0 0.0
  %382 = vmatpush1.msra.mxu0 0.0
  %383 = vmatprep.subr.mxu0 0.0
  %384 = vmatpush1.msra.mxu0 0.0
  %385 = vmatprep.subr.mxu0 0.0
  %386 = vmatpush1.msra.mxu0 0.0
  %387 = vmatprep.subr.mxu0 0.0
  %388 = vmatpush1.msra.mxu0 0.0
  %389 = vmatprep.subr.mxu0 0.0
  %390 = vmatpush1.msra.mxu0 0.0
  %391 = vmatprep.subr.mxu0 0.0
  %392 = vmatpush1.msra.mxu0 0.0
  %393 = vmatprep.subr.mxu0 0.0
  %394 = vmatpush1.msra.mxu0 0.0
  %395 = vmatprep.subr.mxu0 0.0
  %396 = vmatpush1.msra.mxu0 0.0
  %397 = vmatprep.subr.mxu0 0.0
  %398 = vmatpush1.msra.mxu0 0.0
  %399 = vmatprep.subr.mxu0 0.0
  %400 = vmatpush1.msra.mxu0 0.0
  %401 = vmatprep.subr.mxu0 0.0
  %402 = vmatpush1.msra.mxu0 0.0
  %403 = vmatprep.subr.mxu0 0.0
  %404 = vmatpush1.msra.mxu0 0.0
  %405 = vmatprep.subr.mxu0 0.0
  %406 = vmatpush1.msra.mxu0 0.0
  %407 = vmatprep.subr.mxu0 0.0
  %408 = vmatpush1.msra.mxu0 0.0
  %409 = vmatprep.subr.mxu0 0.0
  %410 = vmatpush1.msra.mxu0 0.0
  %411 = vmatprep.subr.mxu0 0.0
  %412 = vmatpush1.msra.mxu0 0.0
  %413 = vmatprep.subr.mxu0 0.0
  %414 = vmatpush1.msra.mxu0 0.0
  %415 = vmatprep.subr.mxu0 0.0
  %416 = vmatpush1.msra.mxu0 0.0
  %417 = vmatprep.subr.mxu0 0.0
  %418 = vmatpush1.msra.mxu0 0.0
  %419 = vmatprep.subr.mxu0 0.0
  %420 = vmatpush1.msra.mxu0 0.0
  %421 = vmatprep.subr.mxu0 0.0
  %422 = vmatpush1.msra.mxu0 0.0
  %423 = vmatprep.subr.mxu0 0.0
  %424 = vmatpush1.msra.mxu0 0.0
  %425 = vmatprep.subr.mxu0 0.0
  %426 = vmatpush1.msra.mxu0 0.0
  %427 = vmatprep.mubr.f32.mxu0 0.0
  %428 = vmatmul.mubr.f32.gmra.mrb[0].mxu0 %v361
  %v429 = vpop.f32.mrb[0].mxu0
  %v430 = vadd.f32 %v358, %v429
  %v431 = vpop.f32.mrb[0].mxu0
  %v432 = vadd.f32 %v358, %v431
  %433 = vdwg.mxu0
  %v434 = vmax.f32 %v430, 0.0
  %v435 = vmax.f32 %v432, 0.0
  %v437 = vcombine.high %v35, %v35
  %v441 = vrot.slane %v434, 4
  %v442 = vrot.slane %v435, 4
  %vm445 = vcmask 1043456
  %v446 = vsel %vm445, %v35, %v441
  %v447 = vsel %vm445, %v437, %v442
  %v449 = vunpack.c.l.s4 1983009808
  %v450 = vunpack.c.0.s8 %v449
  %v451 = vlaneseq
  %v452 = vshrl.u32 %v451, 7
  %v453 = vsub.s32 %v450, %v452
  %v454 = vrot.slane %v446, %v453
  %v455 = vcombine.high %v446, 0.0
  %v457 = vunpack.c.l.s4 1983009808
  %v458 = vunpack.c.0.s8 %v457
  %v459 = vlaneseq
  %v460 = vshrl.u32 %v459, 7
  %v461 = vsub.s32 %v458, %v460
  %v462 = vrot.slane %v447, %v461
  %v463 = vcombine.high %v447, 0.0
  %v464 = vcombine.low %v454, %v462
  %v465 = vcombine.high %v454, %v462
  %v467 = vunpack.c.l.s4 1934713408
  %v468 = vunpack.c.0.s8 %v467
  %v469 = vlaneseq
  %v470 = vshrl.u32 %v469, 7
  %v471 = vsub.s32 %v468, %v470
  %v472 = vrot.slane %v464, %v471
  %v474 = vunpack.c.l.s4 1934713408
  %v475 = vunpack.c.0.s8 %v474
  %v476 = vlaneseq
  %v477 = vshrl.u32 %v476, 7
  %v478 = vsub.s32 %v475, %v477
  %v479 = vrot.slane %v465, %v478
  %v480 = vcombine.low %v455, %v463
  %v481 = vcombine.high %v472, 0.0
  %v482 = vcombine.high %v479, 0.0
  %v484 = vunpack.c.l.s4 1934713408
  %v485 = vunpack.c.0.s8 %v484
  %v486 = vlaneseq
  %v487 = vshrl.u32 %v486, 7
  %v488 = vsub.s32 %v485, %v487
  %v489 = vrot.slane %v480, %v488
  %v490 = vlaneseq
  %v491 = vand.u32 %v490, 127
  %vm492 = vcmp.lt.s32.totalorder %v491, 16
  %v493 = vsel %vm492, %v489, -inf
  %vm494 = vcmask 1041408
  %v495 = vsel %vm494, %v493, -inf
  %496 = vmax.xlane.f32.xlu0 %v495
  %v497 = vpop.xlane.xlu0 %496
  %vm498 = vcmp.eq.f32.partialorder %v493, %v497
  %v499 = vsel %vm498, %v491, 128
  %v500 = vsel %vm494, %v499, 2147483647
  %v501 = vand.u32 %v500, 65535
  %v502 = vshra.s32 %v500, 16
  %v503 = vcvt.s32.f32 %v501
  %v504 = vcvt.s32.f32 %v502
  %505 = vmin.xlane.f32.xlu0 %v504
  %v506 = vpop.xlane.xlu0 %505
  %vm507 = vcmp.eq.f32.partialorder %v504, %v506
  %v508 = vsel %vm507, %v503, inf
  %509 = vmin.xlane.f32.xlu0 %v508
  %v510 = vpop.xlane.xlu0 %509
  %v511 = vcvt.f32.s32 %v510
  %v512 = vcvt.f32.s32 %v506
  %v513 = vshll.u32 %v512, 16
  %v514 = vadd.s32 %v513, %v511
  %vm515 = vcmp.eq.s32.totalorder %v491, %v514
  %v516 = vsel %vm515, -inf, %v493
  %vm517 = vcmp.eq.s32.totalorder %v491, 0
  %v518 = vsel %vm517, %v514, 0
  %v519 = vsel %vm515, 1, 0
  %v520 = vcvt.s32.f32 %v519
  %v521 = vmul.f32 %v472, %v520
  %v522 = vmul.f32 %v481, %v520
  %v523 = vmul.f32 %v479, %v520
  %v524 = vmul.f32 %v482, %v520
  %v525 = vmul.f32 %v489, %v520
  %v526 = vsel %vm494, %v521, 0.0
  %527 = vadd.xlane.f32.xlu0 %v526
  %v528 = vpop.xlane.xlu0 %527
  %v529 = vsel %vm494, %v522, 0.0
  %530 = vadd.xlane.f32.xlu0 %v529
  %v531 = vpop.xlane.xlu0 %530
  %v532 = vsel %vm494, %v523, 0.0
  %533 = vadd.xlane.f32.xlu0 %v532
  %v534 = vpop.xlane.xlu0 %533
  %v535 = vsel %vm494, %v524, 0.0
  %536 = vadd.xlane.f32.xlu0 %v535
  %v537 = vpop.xlane.xlu0 %536
  %v538 = vsel %vm494, %v525, 0.0
  %539 = vadd.xlane.f32.xlu0 %v538
  %v540 = vpop.xlane.xlu0 %539
  %v541 = vsel %vm494, %v516, -inf
  %542 = vmax.xlane.f32.xlu0 %v541
  %v543 = vpop.xlane.xlu0 %542
  %vm544 = vcmp.eq.f32.partialorder %v516, %v543
  %v545 = vsel %vm544, %v491, 128
  %v546 = vsel %vm494, %v545, 2147483647
  %v547 = vand.u32 %v546, 65535
  %v548 = vshra.s32 %v546, 16
  %v549 = vcvt.s32.f32 %v547
  %v550 = vcvt.s32.f32 %v548
  %551 = vmin.xlane.f32.xlu0 %v550
  %v552 = vpop.xlane.xlu0 %551
  %vm553 = vcmp.eq.f32.partialorder %v550, %v552
  %v554 = vsel %vm553, %v549, inf
  %555 = vmin.xlane.f32.xlu0 %v554
  %v556 = vpop.xlane.xlu0 %555
  %v557 = vcvt.f32.s32 %v556
  %v558 = vcvt.f32.s32 %v552
  %v559 = vshll.u32 %v558, 16
  %v560 = vadd.s32 %v559, %v557
  %vm561 = vcmp.eq.s32.totalorder %v491, %v560
  %v562 = vsel %vm561, -inf, %v516
  %vm563 = vcmp.eq.s32.totalorder %v491, 1
  %v564 = vsel %vm563, %v560, %v518
  %v565 = vsel %vm561, 1, 0
  %v566 = vcvt.s32.f32 %v565
  %v567 = vmul.f32 %v472, %v566
  %v568 = vmul.f32 %v481, %v566
  %v569 = vmul.f32 %v479, %v566
  %v570 = vmul.f32 %v482, %v566
  %v571 = vmul.f32 %v489, %v566
  %v572 = vsel %vm494, %v567, 0.0
  %573 = vadd.xlane.f32.xlu0 %v572
  %v574 = vpop.xlane.xlu0 %573
  %v575 = vsel %vm494, %v568, 0.0
  %576 = vadd.xlane.f32.xlu0 %v575
  %v577 = vpop.xlane.xlu0 %576
  %v578 = vsel %vm494, %v569, 0.0
  %579 = vadd.xlane.f32.xlu0 %v578
  %v580 = vpop.xlane.xlu0 %579
  %v581 = vsel %vm494, %v570, 0.0
  %582 = vadd.xlane.f32.xlu0 %v581
  %v583 = vpop.xlane.xlu0 %582
  %v584 = vsel %vm494, %v571, 0.0
  %585 = vadd.xlane.f32.xlu0 %v584
  %v586 = vpop.xlane.xlu0 %585
  %v587 = vsel %vm494, %v562, -inf
  %588 = vmax.xlane.f32.xlu0 %v587
  %v589 = vpop.xlane.xlu0 %588
  %vm590 = vcmp.eq.f32.partialorder %v562, %v589
  %v591 = vsel %vm590, %v491, 128
  %v592 = vsel %vm494, %v591, 2147483647
  %v593 = vand.u32 %v592, 65535
  %v594 = vshra.s32 %v592, 16
  %v595 = vcvt.s32.f32 %v593
  %v596 = vcvt.s32.f32 %v594
  %597 = vmin.xlane.f32.xlu0 %v596
  %v598 = vpop.xlane.xlu0 %597
  %vm599 = vcmp.eq.f32.partialorder %v596, %v598
  %v600 = vsel %vm599, %v595, inf
  %601 = vmin.xlane.f32.xlu0 %v600
  %v602 = vpop.xlane.xlu0 %601
  %v603 = vcvt.f32.s32 %v602
  %v604 = vcvt.f32.s32 %v598
  %v605 = vshll.u32 %v604, 16
  %v606 = vadd.s32 %v605, %v603
  %vm607 = vcmp.eq.s32.totalorder %v491, %v606
  %v608 = vsel %vm607, -inf, %v562
  %vm609 = vcmp.eq.s32.totalorder %v491, 2
  %v610 = vsel %vm609, %v606, %v564
  %v611 = vsel %vm607, 1, 0
  %v612 = vcvt.s32.f32 %v611
  %v613 = vmul.f32 %v472, %v612
  %v614 = vmul.f32 %v481, %v612
  %v615 = vmul.f32 %v479, %v612
  %v616 = vmul.f32 %v482, %v612
  %v617 = vmul.f32 %v489, %v612
  %v618 = vsel %vm494, %v613, 0.0
  %619 = vadd.xlane.f32.xlu0 %v618
  %v620 = vpop.xlane.xlu0 %619
  %v621 = vsel %vm494, %v614, 0.0
  %622 = vadd.xlane.f32.xlu0 %v621
  %v623 = vpop.xlane.xlu0 %622
  %v624 = vsel %vm494, %v615, 0.0
  %625 = vadd.xlane.f32.xlu0 %v624
  %v626 = vpop.xlane.xlu0 %625
  %v627 = vsel %vm494, %v616, 0.0
  %628 = vadd.xlane.f32.xlu0 %v627
  %v629 = vpop.xlane.xlu0 %628
  %v630 = vsel %vm494, %v617, 0.0
  %631 = vadd.xlane.f32.xlu0 %v630
  %v632 = vpop.xlane.xlu0 %631
  %v633 = vsel %vm494, %v608, -inf
  %634 = vmax.xlane.f32.xlu0 %v633
  %v635 = vpop.xlane.xlu0 %634
  %vm636 = vcmp.eq.f32.partialorder %v608, %v635
  %v637 = vsel %vm636, %v491, 128
  %v638 = vsel %vm494, %v637, 2147483647
  %v639 = vand.u32 %v638, 65535
  %v640 = vshra.s32 %v638, 16
  %v641 = vcvt.s32.f32 %v639
  %v642 = vcvt.s32.f32 %v640
  %643 = vmin.xlane.f32.xlu0 %v642
  %v644 = vpop.xlane.xlu0 %643
  %vm645 = vcmp.eq.f32.partialorder %v642, %v644
  %v646 = vsel %vm645, %v641, inf
  %647 = vmin.xlane.f32.xlu0 %v646
  %v648 = vpop.xlane.xlu0 %647
  %v649 = vcvt.f32.s32 %v648
  %v650 = vcvt.f32.s32 %v644
  %v651 = vshll.u32 %v650, 16
  %v652 = vadd.s32 %v651, %v649
  %vm653 = vcmp.eq.s32.totalorder %v491, %v652
  %v654 = vsel %vm653, -inf, %v608
  %vm655 = vcmp.eq.s32.totalorder %v491, 3
  %v656 = vsel %vm655, %v652, %v610
  %v657 = vsel %vm653, 1, 0
  %v658 = vcvt.s32.f32 %v657
  %v659 = vmul.f32 %v472, %v658
  %v660 = vmul.f32 %v481, %v658
  %v661 = vmul.f32 %v479, %v658
  %v662 = vmul.f32 %v482, %v658
  %v663 = vmul.f32 %v489, %v658
  %v664 = vsel %vm494, %v659, 0.0
  %665 = vadd.xlane.f32.xlu0 %v664
  %v666 = vpop.xlane.xlu0 %665
  %v667 = vsel %vm494, %v660, 0.0
  %668 = vadd.xlane.f32.xlu0 %v667
  %v669 = vpop.xlane.xlu0 %668
  %v670 = vsel %vm494, %v661, 0.0
  %671 = vadd.xlane.f32.xlu0 %v670
  %v672 = vpop.xlane.xlu0 %671
  %v673 = vsel %vm494, %v662, 0.0
  %674 = vadd.xlane.f32.xlu0 %v673
  %v675 = vpop.xlane.xlu0 %674
  %v676 = vsel %vm494, %v663, 0.0
  %677 = vadd.xlane.f32.xlu0 %v676
  %v678 = vpop.xlane.xlu0 %677
  %v679 = vsel %vm494, %v654, -inf
  %680 = vmax.xlane.f32.xlu0 %v679
  %v681 = vpop.xlane.xlu0 %680
  %vm682 = vcmp.eq.f32.partialorder %v654, %v681
  %v683 = vsel %vm682, %v491, 128
  %v684 = vsel %vm494, %v683, 2147483647
  %v685 = vand.u32 %v684, 65535
  %v686 = vshra.s32 %v684, 16
  %v687 = vcvt.s32.f32 %v685
  %v688 = vcvt.s32.f32 %v686
  %689 = vmin.xlane.f32.xlu0 %v688
  %v690 = vpop.xlane.xlu0 %689
  %vm691 = vcmp.eq.f32.partialorder %v688, %v690
  %v692 = vsel %vm691, %v687, inf
  %693 = vmin.xlane.f32.xlu0 %v692
  %v694 = vpop.xlane.xlu0 %693
  %v695 = vcvt.f32.s32 %v694
  %v696 = vcvt.f32.s32 %v690
  %v697 = vshll.u32 %v696, 16
  %v698 = vadd.s32 %v697, %v695
  %vm699 = vcmp.eq.s32.totalorder %v491, %v698
  %vm700 = vcmp.eq.s32.totalorder %v491, 4
  %v701 = vsel %vm700, %v698, %v656
  %v702 = vsel %vm699, 1, 0
  %v703 = vcvt.s32.f32 %v702
  %v704 = vmul.f32 %v472, %v703
  %v705 = vmul.f32 %v481, %v703
  %v706 = vmul.f32 %v479, %v703
  %v707 = vmul.f32 %v482, %v703
  %v708 = vmul.f32 %v489, %v703
  %v709 = vsel %vm494, %v704, 0.0
  %710 = vadd.xlane.f32.xlu0 %v709
  %v711 = vpop.xlane.xlu0 %710
  %v712 = vsel %vm494, %v705, 0.0
  %713 = vadd.xlane.f32.xlu0 %v712
  %v714 = vpop.xlane.xlu0 %713
  %v715 = vsel %vm494, %v706, 0.0
  %716 = vadd.xlane.f32.xlu0 %v715
  %v717 = vpop.xlane.xlu0 %716
  %v718 = vsel %vm494, %v707, 0.0
  %719 = vadd.xlane.f32.xlu0 %v718
  %v720 = vpop.xlane.xlu0 %719
  %v721 = vsel %vm494, %v708, 0.0
  %722 = vadd.xlane.f32.xlu0 %v721
  %v723 = vpop.xlane.xlu0 %722
  %v729 = vlaneseq
  %v730 = vshrl.u32 %v729, 7
  %v731 = vsub.s32 %v491, %v730
  %v732 = vrot.slane %v528, %v731
  %v733 = vlaneseq
  %v734 = vshrl.u32 %v733, 7
  %v735 = vsub.s32 %v491, %v734
  %v736 = vrot.slane %v531, %v735
  %v737 = vlaneseq
  %v738 = vshrl.u32 %v737, 7
  %v739 = vsub.s32 %v491, %v738
  %v740 = vrot.slane %v534, %v739
  %v741 = vlaneseq
  %v742 = vshrl.u32 %v741, 7
  %v743 = vsub.s32 %v491, %v742
  %v744 = vrot.slane %v537, %v743
  %v745 = vlaneseq
  %v746 = vshrl.u32 %v745, 7
  %v747 = vsub.s32 %v491, %v746
  %v748 = vrot.slane %v540, %v747
  %vm749 = vcmask 1041409
  %v750 = vsel %vm749, %v736, %v732
  %vm751 = vcmask 1042434
  %v752 = vsel %vm751, %v740, %v750
  %vm753 = vcmask 1043459
  %v754 = vsel %vm753, %v744, %v752
  %vm755 = vcmask 1044484
  %v756 = vsel %vm755, %v748, %v754
  %v763 = vadd.s32 %v491, 4294967294
  %v764 = vlaneseq
  %v765 = vshrl.u32 %v764, 7
  %v766 = vsub.s32 %v763, %v765
  %v767 = vrot.slane %v574, %v766
  %v768 = vlaneseq
  %v769 = vshrl.u32 %v768, 7
  %v770 = vsub.s32 %v763, %v769
  %v771 = vrot.slane %v577, %v770
  %v772 = vlaneseq
  %v773 = vshrl.u32 %v772, 7
  %v774 = vsub.s32 %v763, %v773
  %v775 = vrot.slane %v580, %v774
  %v776 = vlaneseq
  %v777 = vshrl.u32 %v776, 7
  %v778 = vsub.s32 %v763, %v777
  %v779 = vrot.slane %v583, %v778
  %v780 = vlaneseq
  %v781 = vshrl.u32 %v780, 7
  %v782 = vsub.s32 %v763, %v781
  %v783 = vrot.slane %v586, %v782
  %v784 = vsel %vm749, %v771, %v767
  %v785 = vsel %vm751, %v775, %v784
  %v786 = vsel %vm753, %v779, %v785
  %v787 = vsel %vm755, %v783, %v786
  %v794 = vadd.s32 %v491, 4294967292
  %v795 = vlaneseq
  %v796 = vshrl.u32 %v795, 7
  %v797 = vsub.s32 %v794, %v796
  %v798 = vrot.slane %v620, %v797
  %v799 = vlaneseq
  %v800 = vshrl.u32 %v799, 7
  %v801 = vsub.s32 %v794, %v800
  %v802 = vrot.slane %v623, %v801
  %v803 = vlaneseq
  %v804 = vshrl.u32 %v803, 7
  %v805 = vsub.s32 %v794, %v804
  %v806 = vrot.slane %v626, %v805
  %v807 = vlaneseq
  %v808 = vshrl.u32 %v807, 7
  %v809 = vsub.s32 %v794, %v808
  %v810 = vrot.slane %v629, %v809
  %v811 = vlaneseq
  %v812 = vshrl.u32 %v811, 7
  %v813 = vsub.s32 %v794, %v812
  %v814 = vrot.slane %v632, %v813
  %v815 = vsel %vm749, %v802, %v798
  %v816 = vsel %vm751, %v806, %v815
  %v817 = vsel %vm753, %v810, %v816
  %v818 = vsel %vm755, %v814, %v817
  %v825 = vadd.s32 %v491, 4294967290
  %v826 = vlaneseq
  %v827 = vshrl.u32 %v826, 7
  %v828 = vsub.s32 %v825, %v827
  %v829 = vrot.slane %v666, %v828
  %v830 = vlaneseq
  %v831 = vshrl.u32 %v830, 7
  %v832 = vsub.s32 %v825, %v831
  %v833 = vrot.slane %v669, %v832
  %v834 = vlaneseq
  %v835 = vshrl.u32 %v834, 7
  %v836 = vsub.s32 %v825, %v835
  %v837 = vrot.slane %v672, %v836
  %v838 = vlaneseq
  %v839 = vshrl.u32 %v838, 7
  %v840 = vsub.s32 %v825, %v839
  %v841 = vrot.slane %v675, %v840
  %v842 = vlaneseq
  %v843 = vshrl.u32 %v842, 7
  %v844 = vsub.s32 %v825, %v843
  %v845 = vrot.slane %v678, %v844
  %v846 = vsel %vm749, %v833, %v829
  %v847 = vsel %vm751, %v837, %v846
  %v848 = vsel %vm753, %v841, %v847
  %v849 = vsel %vm755, %v845, %v848
  %v856 = vadd.s32 %v491, 4294967288
  %v857 = vlaneseq
  %v858 = vshrl.u32 %v857, 7
  %v859 = vsub.s32 %v856, %v858
  %v860 = vrot.slane %v711, %v859
  %v861 = vlaneseq
  %v862 = vshrl.u32 %v861, 7
  %v863 = vsub.s32 %v856, %v862
  %v864 = vrot.slane %v714, %v863
  %v865 = vlaneseq
  %v866 = vshrl.u32 %v865, 7
  %v867 = vsub.s32 %v856, %v866
  %v868 = vrot.slane %v717, %v867
  %v869 = vlaneseq
  %v870 = vshrl.u32 %v869, 7
  %v871 = vsub.s32 %v856, %v870
  %v872 = vrot.slane %v720, %v871
  %v873 = vlaneseq
  %v874 = vshrl.u32 %v873, 7
  %v875 = vsub.s32 %v856, %v874
  %v876 = vrot.slane %v723, %v875
  %v877 = vsel %vm749, %v864, %v860
  %v878 = vsel %vm751, %v868, %v877
  %v879 = vsel %vm753, %v872, %v878
  %v880 = vsel %vm755, %v876, %v879
  %vm882 = vcmask 15360
  %v883 = vsel %vm882, %v756, %v787
  %vm884 = vcmask 31744
  %v885 = vsel %vm884, %v883, %v818
  %vm886 = vcmask 48128
  %v887 = vsel %vm886, %v885, %v849
  %v888 = vsel %vm92, %v887, %v880
  %vm889 = vcmask 80896
  %v890 = vsel %vm889, %v888, 0.0
  %891 = vst [vmem:[%s8] sm:$0x1f] %v890
  %892 = vst [vmem:[%s9] sm:$0x3] %v701
  // Predicated region
  $region34: #{sortnet_forward.1} parent=0 // pred_check
    _
  $region35: #{sortnet_forward.1} parent=0 // pred_check_branch
    %894 = sbr.rel (0) target = $region37
  $region36: #{sortnet_forward.1} parent=0 // pred_region
    _
  $region37: #{sortnet_forward.1} parent=0 // pred_fallthru
    _
  // Predicated region
  $region38: #{sortnet_forward.1} parent=0 // pred_check
    _
  $region39: #{sortnet_forward.1} parent=0 // pred_check_branch
    %896 = sbr.rel (0) target = $region41
  $region40: #{sortnet_forward.1} parent=0 // pred_region
    _
  $region41: #{sortnet_forward.1} parent=0 // pred_fallthru
    _
  // Predicated region
  $region42: #{sortnet_forward.1} parent=0 // pred_check
    _
  $region43: #{sortnet_forward.1} parent=0 // pred_check_branch
    %898 = sbr.rel (0) target = $region45
  $region44: #{sortnet_forward.1} parent=0 // pred_region
    _
  $region45: #{sortnet_forward.1} parent=0 // pred_fallthru
    _
  // Predicated region
  $region46: #{sortnet_forward.1} parent=0 // pred_check
    _
  $region47: #{sortnet_forward.1} parent=0 // pred_check_branch
    %900 = sbr.rel (0) target = $region49
  $region48: #{sortnet_forward.1} parent=0 // pred_region
    _
  $region49: #{sortnet_forward.1} parent=0 // pred_fallthru
    _

</llo_original>
